<compile_context>
chip_gen: v7x
topology: tpu7x:2x2x1
jax: 0.10.0
libtpu: 0.0.40
codegen_flags: <defaults>
</compile_context>

<pallas_src>
import functools

import jax
import jax.numpy as jnp
from jax.experimental import pallas as pl

DROPOUT_P = 0.03
INV_SCALE_FACTOR = 2.4


def _sdpa_dropout_kernel(q_ref, k_ref, v_ref, u_ref, o_ref, *,
                         dropout_p, inv_scale_factor):
    # Fold 1/inv_scale into q so the scores need no extra per-element scaling.
    q = q_ref[...] * jnp.float32(1.0 / inv_scale_factor)   # (B, Lq, D)
    k = k_ref[...]                                          # (B, Lk, D)
    v = v_ref[...]                                          # (B, Lk, Dv)

    # scores = (q / inv_scale) @ k^T — contraction over last dims, no transpose.
    s = jnp.einsum("bqd,bkd->bqk", q, k,
                   preferred_element_type=jnp.float32)      # (B, Lq, Lk)

    # Numerically stable softmax over the last axis.
    m = jnp.max(s, axis=-1, keepdims=True)
    e = jnp.exp(s - m)
    denom = jnp.sum(e, axis=-1, keepdims=True)

    # Dropout: drop with prob p (u < p), keep scaled by 1/(1-p).
    keep = u_ref[...] >= jnp.float32(dropout_p)
    # Fold softmax normalization and dropout rescale into one multiply.
    scale = jnp.float32(1.0 / (1.0 - dropout_p)) / denom     # (B, Lq, 1)
    p_drop = jnp.where(keep, e, jnp.float32(0.0)) * scale    # (B, Lq, Lk)

    # output = dropout_qk @ value
    o_ref[...] = jnp.einsum("bqk,bkd->bqd", p_drop, v,
                            preferred_element_type=jnp.float32
                            ).astype(o_ref.dtype)


def sdpa_dropout(query, key, value, dropout_u, *, dropout_p=DROPOUT_P,
                 inv_scale_factor=INV_SCALE_FACTOR):
    B, Lq, D = query.shape
    Bk, Lk, Dk = key.shape
    Bv, Lv, Dv = value.shape
    assert Bk == B and Bv == B and Dk == D and Lv == Lk
    assert dropout_u.shape == (B, Lq, Lk)

    kernel = functools.partial(_sdpa_dropout_kernel,
                               dropout_p=dropout_p,
                               inv_scale_factor=inv_scale_factor)

    # Single invocation, no grid: the whole problem (~6 KiB) fits in VMEM many
    # times over, so one launch avoids per-grid-step (~0.35 us) overhead and
    # per-batch DMAs.  Whole arrays are placed in VMEM by default.
    return pl.pallas_call(
        kernel,
        out_shape=jax.ShapeDtypeStruct((B, Lq, Dv), jnp.float32),
    )(query, key, value, dropout_u)


if __name__ == "__main__":
    B, Lq, Lk, D, Dv = 2, 8, 8, 32, 32

    root = jax.random.PRNGKey(0)
    kq, kk, kv, kd = jax.random.split(root, 4)
    query = jax.random.normal(kq, (B, Lq, D), dtype=jnp.float32)
    key = jax.random.normal(kk, (B, Lk, D), dtype=jnp.float32)
    value = jax.random.normal(kv, (B, Lk, Dv), dtype=jnp.float32)
    dropout_u = jax.random.uniform(kd, (B, Lq, Lk), dtype=jnp.float32)

    out = sdpa_dropout(query, key, value, dropout_u)
    jax.block_until_ready(out)
    assert out.shape == (B, Lq, Dv)
    assert bool(jnp.all(jnp.isfinite(out)))

    # Pure-JAX reference with the same dropout mask.
    s_ref = jnp.einsum("bqd,bkd->bqk", query, key) / INV_SCALE_FACTOR
    sm_ref = jax.nn.softmax(s_ref, axis=-1)
    keep_ref = dropout_u >= DROPOUT_P
    ref = jnp.einsum("bqk,bkd->bqd",
                     jnp.where(keep_ref, sm_ref / (1.0 - DROPOUT_P), 0.0),
                     value)
    assert bool(jnp.allclose(out, ref, atol=1e-4, rtol=1e-4))

    print("KERNEL_OK")
</pallas_src>

<mosaic_0001>
module attributes {stable_mosaic.version = 11 : i64} {
  func.func @_sdpa_dropout_kernel(%arg0: memref<2x8x32xf32, #tpu.memory_space<vmem>>, %arg1: memref<2x8x32xf32, #tpu.memory_space<vmem>>, %arg2: memref<2x8x32xf32, #tpu.memory_space<vmem>>, %arg3: memref<2x8x8xf32, #tpu.memory_space<vmem>>, %arg4: memref<2x8x32xf32, #tpu.memory_space<vmem>>) attributes {dimension_semantics = [], scalar_prefetch = 0 : i64, scratch_operands = 0 : i64, tpu.core_type = #tpu.core_type<tc>} {
    %c0 = arith.constant 0 : index
    %c0_0 = arith.constant 0 : index
    %c0_1 = arith.constant 0 : index
    %0 = vector.load %arg0[%c0, %c0_0, %c0_1] : memref<2x8x32xf32, #tpu.memory_space<vmem>>, vector<2x8x32xf32>
    %cst = arith.constant 0.416666657 : f32
    %1 = vector.broadcast %cst : f32 to vector<2x8x32xf32>
    %2 = arith.mulf %0, %1 : vector<2x8x32xf32>
    %c0_2 = arith.constant 0 : index
    %c0_3 = arith.constant 0 : index
    %c0_4 = arith.constant 0 : index
    %3 = vector.load %arg1[%c0_2, %c0_3, %c0_4] : memref<2x8x32xf32, #tpu.memory_space<vmem>>, vector<2x8x32xf32>
    %c0_5 = arith.constant 0 : index
    %c0_6 = arith.constant 0 : index
    %c0_7 = arith.constant 0 : index
    %4 = vector.load %arg2[%c0_5, %c0_6, %c0_7] : memref<2x8x32xf32, #tpu.memory_space<vmem>>, vector<2x8x32xf32>
    "tpu.trace_start"() <{level = 10 : i32, message = "bqd,bkd->bqk"}> : () -> ()
    %cst_8 = arith.constant dense<0.000000e+00> : vector<2x8x8xf32>
    %5 = tpu.matmul %2, %3, %cst_8 {dimension_numbers = #tpu.dot_dimension_numbers<[2], [2], [1], [1], [0, 0, 0, 1, 1, 1], [0], [0]>} : vector<2x8x32xf32>, vector<2x8x32xf32>, vector<2x8x8xf32> -> vector<2x8x8xf32>
    "tpu.trace_stop"() : () -> ()
    %cst_9 = arith.constant dense<0xFF800000> : vector<2x8xf32>
    %6 = vector.multi_reduction <maximumf>, %5, %cst_9 [2] : vector<2x8x8xf32> to vector<2x8xf32>
    %7 = vector.shape_cast %6 : vector<2x8xf32> to vector<2x8x1xf32>
    %8 = vector.broadcast %7 : vector<2x8x1xf32> to vector<2x8x8xf32>
    %9 = arith.subf %5, %8 : vector<2x8x8xf32>
    %10 = math.exp %9 : vector<2x8x8xf32>
    %cst_10 = arith.constant dense<0.000000e+00> : vector<2x8xf32>
    %11 = vector.multi_reduction <add>, %10, %cst_10 [2] : vector<2x8x8xf32> to vector<2x8xf32>
    %12 = vector.shape_cast %11 : vector<2x8xf32> to vector<2x8x1xf32>
    %c0_11 = arith.constant 0 : index
    %c0_12 = arith.constant 0 : index
    %c0_13 = arith.constant 0 : index
    %13 = vector.load %arg3[%c0_11, %c0_12, %c0_13] : memref<2x8x8xf32, #tpu.memory_space<vmem>>, vector<2x8x8xf32>
    %cst_14 = arith.constant 3.000000e-02 : f32
    %14 = vector.broadcast %cst_14 : f32 to vector<2x8x8xf32>
    %15 = arith.cmpf oge, %13, %14 : vector<2x8x8xf32>
    %cst_15 = arith.constant 1.03092778 : f32
    %16 = vector.broadcast %cst_15 : f32 to vector<2x8x1xf32>
    %17 = arith.divf %16, %12 : vector<2x8x1xf32>
    %cst_16 = arith.constant 0.000000e+00 : f32
    %18 = vector.broadcast %cst_16 : f32 to vector<2x8x8xf32>
    %19 = arith.select %15, %10, %18 : vector<2x8x8xi1>, vector<2x8x8xf32>
    %20 = vector.broadcast %17 : vector<2x8x1xf32> to vector<2x8x8xf32>
    %21 = arith.mulf %19, %20 : vector<2x8x8xf32>
    "tpu.trace_start"() <{level = 10 : i32, message = "bqk,bkd->bqd"}> : () -> ()
    %cst_17 = arith.constant dense<0.000000e+00> : vector<2x8x32xf32>
    %22 = tpu.matmul %21, %4, %cst_17 {dimension_numbers = #tpu.dot_dimension_numbers<[2], [1], [1], [2], [0, 0, 0, 1, 1, 2], [0], [0]>} : vector<2x8x8xf32>, vector<2x8x32xf32>, vector<2x8x32xf32> -> vector<2x8x32xf32>
    "tpu.trace_stop"() : () -> ()
    %c0_18 = arith.constant 0 : index
    %c0_19 = arith.constant 0 : index
    %c0_20 = arith.constant 0 : index
    %23 = vector.load %arg4[%c0_18, %c0_19, %c0_20] : memref<2x8x32xf32, #tpu.memory_space<vmem>>, vector<2x8x32xf32>
    tpu.vector_store %arg4[%c0_18, %c0_19, %c0_20], %22 {strides = array<i32>} : memref<2x8x32xf32, #tpu.memory_space<vmem>>, vector<2x8x32xf32>,
    return
  }
}

</mosaic_0001>

<llo_original>
// kernel: tpu_custom_call.1
$region0: #{tpu_custom_call.1}
  #allocation0 [shape = 'u32[]', space=smem, size = 0x4, offset = 0x4, fixed_abs, tag = 'smem constant byte address 0x4 - core index']
  #allocation1 [shape = 'u32[144,128]{1,0:T(1,128)}', space=vmem, size = 0x12000, scoped, tag = 'internal scratch']
  %s0 = inlined_call_operand.hbm [shape: f32[2,8,32], index: 0, kind: input, shape index: {}]
  %s1 = inlined_call_operand.hbm [shape: f32[2,8,32], index: 1, kind: input, shape index: {}]
  %s2 = inlined_call_operand.hbm [shape: f32[2,8,32], index: 2, kind: input, shape index: {}]
  %s3 = inlined_call_operand.hbm [shape: f32[2,8,8], index: 3, kind: input, shape index: {}]
  %s4 = inlined_call_operand.hbm [shape: f32[2,8,32], index: 4, kind: output, shape index: {}]
  %s5 = sld [smem:[#allocation0]]
  $region42: #{tpu_custom_call.1} parent=0
    _
  %s7 = ssub.s32 1, %s5
  %s8 = scalar_select 0, %s7, %s5
  $region1: #{tpu_custom_call.1} parent=0
    #allocation2 [shape = 'u8[8192]{0}', space=vmem, size = 0x2000, scoped, tag = 'input window, operand 0, single buffered']
    #allocation3 [shape = 's32[1]{0}', space=sflag, size = 0x4, scoped, tag = 'scoped memory for tpu_custom_call.1']
    #allocation4 [shape = 's32[1]{0}', space=sflag, size = 0x4, scoped, tag = 'scoped memory for tpu_custom_call.1']
    #allocation5 [shape = 'u8[8192]{0}', space=vmem, size = 0x2000, scoped, tag = 'input window, operand 1, single buffered']
    #allocation6 [shape = 's32[1]{0}', space=sflag, size = 0x4, scoped, tag = 'scoped memory for tpu_custom_call.1']
    #allocation7 [shape = 'u8[8192]{0}', space=vmem, size = 0x2000, scoped, tag = 'input window, operand 2, single buffered']
    #allocation8 [shape = 'u8[8192]{0}', space=vmem, size = 0x2000, scoped, tag = 'input window, operand 3, single buffered']
    #allocation9 [shape = 's32[1]{0}', space=sflag, size = 0x4, scoped, tag = 'scoped memory for tpu_custom_call.1']
    #allocation10 [shape = 'u8[8192]{0}', space=vmem, size = 0x2000, scoped, tag = 'output window, operand 0, single buffered']
    %9 = vsyncpa [#allocation3], 0
    %10 = vsyncpa [#allocation6], 0
    %11 = vsyncpa [#allocation9], 0
    %12 = vsyncpa [#allocation4], 0
    // Predicated region
    $region2: #{tpu_custom_call.1} parent=1 // pred_check
      _
    $region3: #{tpu_custom_call.1} parent=1 // pred_check_branch
      %14 = sbr.rel (0) target = $region5
    $region4: #{tpu_custom_call.1} parent=1 // pred_region
      %s16 = ssub.s32 256, 256
      %17 = vsyncadd [#allocation3], %s16
      %s18 = sshll.u32 [#allocation2], 4
      %s19 = int_to_ptr.vmem [resolvable:$true] %s18
      %24 = dma.hbm_to_vmem [thread:$0]  %s0, 256, %s19, [#allocation3], 128, 128, 8
    $region5: #{tpu_custom_call.1} parent=1 // pred_fallthru
      _
    // Predicated region
    $region6: #{tpu_custom_call.1} parent=1 // pred_check
      _
    $region7: #{tpu_custom_call.1} parent=1 // pred_check_branch
      %26 = sbr.rel (0) target = $region9
    $region8: #{tpu_custom_call.1} parent=1 // pred_region
      %s28 = ssub.s32 256, 256
      %29 = vsyncadd [#allocation6], %s28
      %s30 = sshll.u32 [#allocation5], 4
      %s31 = int_to_ptr.vmem [resolvable:$true] %s30
      %36 = dma.hbm_to_vmem [thread:$0]  %s1, 256, %s31, [#allocation6], 128, 128, 8
    $region9: #{tpu_custom_call.1} parent=1 // pred_fallthru
      _
    // Predicated region
    $region10: #{tpu_custom_call.1} parent=1 // pred_check
      _
    $region11: #{tpu_custom_call.1} parent=1 // pred_check_branch
      %38 = sbr.rel (0) target = $region13
    $region12: #{tpu_custom_call.1} parent=1 // pred_region
      %s40 = ssub.s32 256, 256
      %41 = vsyncadd [#allocation6], %s40
      %s42 = sshll.u32 [#allocation7], 4
      %s43 = int_to_ptr.vmem [resolvable:$true] %s42
      %48 = dma.hbm_to_vmem [thread:$0]  %s2, 256, %s43, [#allocation6], 128, 128, 8
    $region13: #{tpu_custom_call.1} parent=1 // pred_fallthru
      _
    // Predicated region
    $region14: #{tpu_custom_call.1} parent=1 // pred_check
      _
    $region15: #{tpu_custom_call.1} parent=1 // pred_check_branch
      %50 = sbr.rel (0) target = $region17
    $region16: #{tpu_custom_call.1} parent=1 // pred_region
      %s52 = ssub.s32 256, 256
      %53 = vsyncadd [#allocation9], %s52
      %s54 = sshll.u32 [#allocation8], 4
      %s55 = int_to_ptr.vmem [resolvable:$true] %s54
      %60 = dma.hbm_to_vmem [thread:$0]  %s3, 256, %s55, [#allocation9], 128, 128, 8
    $region17: #{tpu_custom_call.1} parent=1 // pred_fallthru
      _
    // Predicated region
    $region18: #{tpu_custom_call.1} parent=1 // pred_check
      _
    $region19: #{tpu_custom_call.1} parent=1 // pred_check_branch
      %62 = sbr.rel (0) target = $region21
    $region20: #{tpu_custom_call.1} parent=1 // pred_region
      %63 = dma.done [#allocation3], 256
    $region21: #{tpu_custom_call.1} parent=1 // pred_fallthru
      _
    // Predicated region
    $region22: #{tpu_custom_call.1} parent=1 // pred_check
      _
    $region23: #{tpu_custom_call.1} parent=1 // pred_check_branch
      %65 = sbr.rel (0) target = $region25
    $region24: #{tpu_custom_call.1} parent=1 // pred_region
      %66 = dma.done [#allocation6], 256
    $region25: #{tpu_custom_call.1} parent=1 // pred_fallthru
      _
    // Predicated region
    $region26: #{tpu_custom_call.1} parent=1 // pred_check
      _
    $region27: #{tpu_custom_call.1} parent=1 // pred_check_branch
      %68 = sbr.rel (0) target = $region29
    $region28: #{tpu_custom_call.1} parent=1 // pred_region
      %69 = dma.done [#allocation6], 256
    $region29: #{tpu_custom_call.1} parent=1 // pred_fallthru
      _
    // Predicated region
    $region30: #{tpu_custom_call.1} parent=1 // pred_check
      _
    $region31: #{tpu_custom_call.1} parent=1 // pred_check_branch
      %71 = sbr.rel (0) target = $region33
    $region32: #{tpu_custom_call.1} parent=1 // pred_region
      %72 = dma.done [#allocation9], 256
    $region33: #{tpu_custom_call.1} parent=1 // pred_fallthru
      _
    %v73 = vld [vmem:[#allocation2] sm:$0xff]
    %v74 = vld [vmem:[#allocation2 + $0x8] sm:$0xff]
    %v75 = vmul.f32 %v73, 0.41666666
    %v76 = vmul.f32 %v74, 0.41666666
    %v77 = vld [vmem:[#allocation5] sm:$0xff]
    %v78 = vld [vmem:[#allocation5 + $0x8] sm:$0xff]
    %v79 = vld [vmem:[#allocation7] sm:$0xff]
    %v80 = vld [vmem:[#allocation7 + $0x8] sm:$0xff]
    %vm81 = vcmask 261120
    %v83 = vsel %vm81, %v75, 0
    %v86 = vsel %vm81, %v77, 0
    %88 = vmatprep.subr.mxu0 0.0
    %89 = vmatpush1.xpose.msra.mxu0 %v86
    %90 = vmatprep.subr.mxu0 0.0
    %91 = vmatpush1.xpose.msra.mxu0 0.0
    %92 = vmatprep.subr.mxu0 0.0
    %93 = vmatpush1.xpose.msra.mxu0 0.0
    %94 = vmatprep.subr.mxu0 0.0
    %95 = vmatpush1.xpose.msra.mxu0 0.0
    %96 = vmatprep.subr.mxu0 0.0
    %97 = vmatpush1.xpose.msra.mxu0 0.0
    %98 = vmatprep.subr.mxu0 0.0
    %99 = vmatpush1.xpose.msra.mxu0 0.0
    %100 = vmatprep.subr.mxu0 0.0
    %101 = vmatpush1.xpose.msra.mxu0 0.0
    %102 = vmatprep.subr.mxu0 0.0
    %103 = vmatpush1.xpose.msra.mxu0 0.0
    %104 = vmatprep.subr.mxu0 0.0
    %105 = vmatpush1.xpose.msra.mxu0 0.0
    %106 = vmatprep.subr.mxu0 0.0
    %107 = vmatpush1.xpose.msra.mxu0 0.0
    %108 = vmatprep.subr.mxu0 0.0
    %109 = vmatpush1.xpose.msra.mxu0 0.0
    %110 = vmatprep.subr.mxu0 0.0
    %111 = vmatpush1.xpose.msra.mxu0 0.0
    %112 = vmatprep.subr.mxu0 0.0
    %113 = vmatpush1.xpose.msra.mxu0 0.0
    %114 = vmatprep.subr.mxu0 0.0
    %115 = vmatpush1.xpose.msra.mxu0 0.0
    %116 = vmatprep.subr.mxu0 0.0
    %117 = vmatpush1.xpose.msra.mxu0 0.0
    %118 = vmatprep.subr.mxu0 0.0
    %119 = vmatpush1.xpose.msra.mxu0 0.0
    %120 = vmatprep.subr.mxu0 0.0
    %121 = vmatpush1.xpose.msra.mxu0 0.0
    %122 = vmatprep.subr.mxu0 0.0
    %123 = vmatpush1.xpose.msra.mxu0 0.0
    %124 = vmatprep.subr.mxu0 0.0
    %125 = vmatpush1.xpose.msra.mxu0 0.0
    %126 = vmatprep.subr.mxu0 0.0
    %127 = vmatpush1.xpose.msra.mxu0 0.0
    %128 = vmatprep.subr.mxu0 0.0
    %129 = vmatpush1.xpose.msra.mxu0 0.0
    %130 = vmatprep.subr.mxu0 0.0
    %131 = vmatpush1.xpose.msra.mxu0 0.0
    %132 = vmatprep.subr.mxu0 0.0
    %133 = vmatpush1.xpose.msra.mxu0 0.0
    %134 = vmatprep.subr.mxu0 0.0
    %135 = vmatpush1.xpose.msra.mxu0 0.0
    %136 = vmatprep.subr.mxu0 0.0
    %137 = vmatpush1.xpose.msra.mxu0 0.0
    %138 = vmatprep.subr.mxu0 0.0
    %139 = vmatpush1.xpose.msra.mxu0 0.0
    %140 = vmatprep.subr.mxu0 0.0
    %141 = vmatpush1.xpose.msra.mxu0 0.0
    %142 = vmatprep.subr.mxu0 0.0
    %143 = vmatpush1.xpose.msra.mxu0 0.0
    %144 = vmatprep.subr.mxu0 0.0
    %145 = vmatpush1.xpose.msra.mxu0 0.0
    %146 = vmatprep.subr.mxu0 0.0
    %147 = vmatpush1.xpose.msra.mxu0 0.0
    %148 = vmatprep.subr.mxu0 0.0
    %149 = vmatpush1.xpose.msra.mxu0 0.0
    %150 = vmatprep.subr.mxu0 0.0
    %151 = vmatpush1.xpose.msra.mxu0 0.0
    %152 = vmatprep.mubr.f32.mxu0 0.0
    %153 = vmatmul.mubr.f32.gmra.mrb[0].mxu0 %v83
    %v154 = vpop.f32.mrb[0].mxu0
    %v155 = vadd.f32 0.0, %v154
    %v156 = vpop.f32.mrb[0].mxu0
    %157 = vdwg.mxu0
    %v159 = vsel %vm81, %v76, 0
    %v162 = vsel %vm81, %v78, 0
    %164 = vmatprep.subr.mxu0 0.0
    %165 = vmatpush1.xpose.msra.mxu0 %v162
    %166 = vmatprep.subr.mxu0 0.0
    %167 = vmatpush1.xpose.msra.mxu0 0.0
    %168 = vmatprep.subr.mxu0 0.0
    %169 = vmatpush1.xpose.msra.mxu0 0.0
    %170 = vmatprep.subr.mxu0 0.0
    %171 = vmatpush1.xpose.msra.mxu0 0.0
    %172 = vmatprep.subr.mxu0 0.0
    %173 = vmatpush1.xpose.msra.mxu0 0.0
    %174 = vmatprep.subr.mxu0 0.0
    %175 = vmatpush1.xpose.msra.mxu0 0.0
    %176 = vmatprep.subr.mxu0 0.0
    %177 = vmatpush1.xpose.msra.mxu0 0.0
    %178 = vmatprep.subr.mxu0 0.0
    %179 = vmatpush1.xpose.msra.mxu0 0.0
    %180 = vmatprep.subr.mxu0 0.0
    %181 = vmatpush1.xpose.msra.mxu0 0.0
    %182 = vmatprep.subr.mxu0 0.0
    %183 = vmatpush1.xpose.msra.mxu0 0.0
    %184 = vmatprep.subr.mxu0 0.0
    %185 = vmatpush1.xpose.msra.mxu0 0.0
    %186 = vmatprep.subr.mxu0 0.0
    %187 = vmatpush1.xpose.msra.mxu0 0.0
    %188 = vmatprep.subr.mxu0 0.0
    %189 = vmatpush1.xpose.msra.mxu0 0.0
    %190 = vmatprep.subr.mxu0 0.0
    %191 = vmatpush1.xpose.msra.mxu0 0.0
    %192 = vmatprep.subr.mxu0 0.0
    %193 = vmatpush1.xpose.msra.mxu0 0.0
    %194 = vmatprep.subr.mxu0 0.0
    %195 = vmatpush1.xpose.msra.mxu0 0.0
    %196 = vmatprep.subr.mxu0 0.0
    %197 = vmatpush1.xpose.msra.mxu0 0.0
    %198 = vmatprep.subr.mxu0 0.0
    %199 = vmatpush1.xpose.msra.mxu0 0.0
    %200 = vmatprep.subr.mxu0 0.0
    %201 = vmatpush1.xpose.msra.mxu0 0.0
    %202 = vmatprep.subr.mxu0 0.0
    %203 = vmatpush1.xpose.msra.mxu0 0.0
    %204 = vmatprep.subr.mxu0 0.0
    %205 = vmatpush1.xpose.msra.mxu0 0.0
    %206 = vmatprep.subr.mxu0 0.0
    %207 = vmatpush1.xpose.msra.mxu0 0.0
    %208 = vmatprep.subr.mxu0 0.0
    %209 = vmatpush1.xpose.msra.mxu0 0.0
    %210 = vmatprep.subr.mxu0 0.0
    %211 = vmatpush1.xpose.msra.mxu0 0.0
    %212 = vmatprep.subr.mxu0 0.0
    %213 = vmatpush1.xpose.msra.mxu0 0.0
    %214 = vmatprep.subr.mxu0 0.0
    %215 = vmatpush1.xpose.msra.mxu0 0.0
    %216 = vmatprep.subr.mxu0 0.0
    %217 = vmatpush1.xpose.msra.mxu0 0.0
    %218 = vmatprep.subr.mxu0 0.0
    %219 = vmatpush1.xpose.msra.mxu0 0.0
    %220 = vmatprep.subr.mxu0 0.0
    %221 = vmatpush1.xpose.msra.mxu0 0.0
    %222 = vmatprep.subr.mxu0 0.0
    %223 = vmatpush1.xpose.msra.mxu0 0.0
    %224 = vmatprep.subr.mxu0 0.0
    %225 = vmatpush1.xpose.msra.mxu0 0.0
    %226 = vmatprep.subr.mxu0 0.0
    %227 = vmatpush1.xpose.msra.mxu0 0.0
    %228 = vmatprep.mubr.f32.mxu0 0.0
    %229 = vmatmul.mubr.f32.gmra.mrb[0].mxu0 %v159
    %v230 = vpop.f32.mrb[0].mxu0
    %v231 = vadd.f32 0.0, %v230
    %v232 = vpop.f32.mrb[0].mxu0
    %233 = vdwg.mxu0
    %vm234 = vcmask 64512
    %v235 = vsel %vm234, %v155, -inf
    %236 = vmax.xlane.f32.xlu0 %v235
    %v237 = vpop.xlane.xlu0 %236
    %v238 = vsel %vm234, %v231, -inf
    %239 = vmax.xlane.f32.xlu0 %v238
    %v240 = vpop.xlane.xlu0 %239
    %v241 = vsub.f32 %v155, %v237
    %v242 = vsub.f32 %v231, %v240
    %v243 = vmul.f32 %v241, 1.442695
    %v244 = vpow.pop %v243
    %v245 = vmul.f32 %v242, 1.442695
    %v246 = vpow.pop %v245
    %v247 = vsel %vm234, %v244, 0.0
    %248 = vadd.xlane.f32.xlu0 %v247
    %v249 = vpop.xlane.xlu0 %248
    %v250 = vsel %vm234, %v246, 0.0
    %251 = vadd.xlane.f32.xlu0 %v250
    %v252 = vpop.xlane.xlu0 %251
    %v253 = vld [vmem:[#allocation8] sm:$0xff]
    %v254 = vld [vmem:[#allocation8 + $0x8] sm:$0xff]
    %vm255 = vcmp.ge.f32.partialorder %v253, 0.03
    %vm256 = vcmp.ge.f32.partialorder %v254, 0.03
    %v257 = vrcp.pop %v249
    %v258 = vmul.f32 1.0309278, %v257
    %v259 = vrcp.pop %v252
    %v260 = vmul.f32 1.0309278, %v259
    %v261 = vsel %vm255, %v244, 0.0
    %v262 = vsel %vm256, %v246, 0.0
    %v263 = vmul.f32 %v261, %v258
    %v264 = vmul.f32 %v262, %v260
    %v266 = vsel %vm234, %v263, 0
    %268 = vmatprep.subr.mxu0 0.0
    %269 = vmatpush1.msra.mxu0 %v79
    %270 = vmatprep.subr.mxu0 0.0
    %271 = vmatpush1.msra.mxu0 0.0
    %272 = vmatprep.subr.mxu0 0.0
    %273 = vmatpush1.msra.mxu0 0.0
    %274 = vmatprep.subr.mxu0 0.0
    %275 = vmatpush1.msra.mxu0 0.0
    %276 = vmatprep.subr.mxu0 0.0
    %277 = vmatpush1.msra.mxu0 0.0
    %278 = vmatprep.subr.mxu0 0.0
    %279 = vmatpush1.msra.mxu0 0.0
    %280 = vmatprep.subr.mxu0 0.0
    %281 = vmatpush1.msra.mxu0 0.0
    %282 = vmatprep.subr.mxu0 0.0
    %283 = vmatpush1.msra.mxu0 0.0
    %284 = vmatprep.subr.mxu0 0.0
    %285 = vmatpush1.msra.mxu0 0.0
    %286 = vmatprep.subr.mxu0 0.0
    %287 = vmatpush1.msra.mxu0 0.0
    %288 = vmatprep.subr.mxu0 0.0
    %289 = vmatpush1.msra.mxu0 0.0
    %290 = vmatprep.subr.mxu0 0.0
    %291 = vmatpush1.msra.mxu0 0.0
    %292 = vmatprep.subr.mxu0 0.0
    %293 = vmatpush1.msra.mxu0 0.0
    %294 = vmatprep.subr.mxu0 0.0
    %295 = vmatpush1.msra.mxu0 0.0
    %296 = vmatprep.subr.mxu0 0.0
    %297 = vmatpush1.msra.mxu0 0.0
    %298 = vmatprep.subr.mxu0 0.0
    %299 = vmatpush1.msra.mxu0 0.0
    %300 = vmatprep.subr.mxu0 0.0
    %301 = vmatpush1.msra.mxu0 0.0
    %302 = vmatprep.subr.mxu0 0.0
    %303 = vmatpush1.msra.mxu0 0.0
    %304 = vmatprep.subr.mxu0 0.0
    %305 = vmatpush1.msra.mxu0 0.0
    %306 = vmatprep.subr.mxu0 0.0
    %307 = vmatpush1.msra.mxu0 0.0
    %308 = vmatprep.subr.mxu0 0.0
    %309 = vmatpush1.msra.mxu0 0.0
    %310 = vmatprep.subr.mxu0 0.0
    %311 = vmatpush1.msra.mxu0 0.0
    %312 = vmatprep.subr.mxu0 0.0
    %313 = vmatpush1.msra.mxu0 0.0
    %314 = vmatprep.subr.mxu0 0.0
    %315 = vmatpush1.msra.mxu0 0.0
    %316 = vmatprep.subr.mxu0 0.0
    %317 = vmatpush1.msra.mxu0 0.0
    %318 = vmatprep.subr.mxu0 0.0
    %319 = vmatpush1.msra.mxu0 0.0
    %320 = vmatprep.subr.mxu0 0.0
    %321 = vmatpush1.msra.mxu0 0.0
    %322 = vmatprep.subr.mxu0 0.0
    %323 = vmatpush1.msra.mxu0 0.0
    %324 = vmatprep.subr.mxu0 0.0
    %325 = vmatpush1.msra.mxu0 0.0
    %326 = vmatprep.subr.mxu0 0.0
    %327 = vmatpush1.msra.mxu0 0.0
    %328 = vmatprep.subr.mxu0 0.0
    %329 = vmatpush1.msra.mxu0 0.0
    %330 = vmatprep.subr.mxu0 0.0
    %331 = vmatpush1.msra.mxu0 0.0
    %332 = vmatprep.mubr.f32.mxu0 0.0
    %333 = vmatmul.mubr.f32.gmra.mrb[0].mxu0 %v266
    %v334 = vpop.f32.mrb[0].mxu0
    %v335 = vadd.f32 0.0, %v334
    %v336 = vpop.f32.mrb[0].mxu0
    %337 = vdwg.mxu0
    %v339 = vsel %vm234, %v264, 0
    %341 = vmatprep.subr.mxu0 0.0
    %342 = vmatpush1.msra.mxu0 %v80
    %343 = vmatprep.subr.mxu0 0.0
    %344 = vmatpush1.msra.mxu0 0.0
    %345 = vmatprep.subr.mxu0 0.0
    %346 = vmatpush1.msra.mxu0 0.0
    %347 = vmatprep.subr.mxu0 0.0
    %348 = vmatpush1.msra.mxu0 0.0
    %349 = vmatprep.subr.mxu0 0.0
    %350 = vmatpush1.msra.mxu0 0.0
    %351 = vmatprep.subr.mxu0 0.0
    %352 = vmatpush1.msra.mxu0 0.0
    %353 = vmatprep.subr.mxu0 0.0
    %354 = vmatpush1.msra.mxu0 0.0
    %355 = vmatprep.subr.mxu0 0.0
    %356 = vmatpush1.msra.mxu0 0.0
    %357 = vmatprep.subr.mxu0 0.0
    %358 = vmatpush1.msra.mxu0 0.0
    %359 = vmatprep.subr.mxu0 0.0
    %360 = vmatpush1.msra.mxu0 0.0
    %361 = vmatprep.subr.mxu0 0.0
    %362 = vmatpush1.msra.mxu0 0.0
    %363 = vmatprep.subr.mxu0 0.0
    %364 = vmatpush1.msra.mxu0 0.0
    %365 = vmatprep.subr.mxu0 0.0
    %366 = vmatpush1.msra.mxu0 0.0
    %367 = vmatprep.subr.mxu0 0.0
    %368 = vmatpush1.msra.mxu0 0.0
    %369 = vmatprep.subr.mxu0 0.0
    %370 = vmatpush1.msra.mxu0 0.0
    %371 = vmatprep.subr.mxu0 0.0
    %372 = vmatpush1.msra.mxu0 0.0
    %373 = vmatprep.subr.mxu0 0.0
    %374 = vmatpush1.msra.mxu0 0.0
    %375 = vmatprep.subr.mxu0 0.0
    %376 = vmatpush1.msra.mxu0 0.0
    %377 = vmatprep.subr.mxu0 0.0
    %378 = vmatpush1.msra.mxu0 0.0
    %379 = vmatprep.subr.mxu0 0.0
    %380 = vmatpush1.msra.mxu0 0.0
    %381 = vmatprep.subr.mxu0 0.0
    %382 = vmatpush1.msra.mxu0 0.0
    %383 = vmatprep.subr.mxu0 0.0
    %384 = vmatpush1.msra.mxu0 0.0
    %385 = vmatprep.subr.mxu0 0.0
    %386 = vmatpush1.msra.mxu0 0.0
    %387 = vmatprep.subr.mxu0 0.0
    %388 = vmatpush1.msra.mxu0 0.0
    %389 = vmatprep.subr.mxu0 0.0
    %390 = vmatpush1.msra.mxu0 0.0
    %391 = vmatprep.subr.mxu0 0.0
    %392 = vmatpush1.msra.mxu0 0.0
    %393 = vmatprep.subr.mxu0 0.0
    %394 = vmatpush1.msra.mxu0 0.0
    %395 = vmatprep.subr.mxu0 0.0
    %396 = vmatpush1.msra.mxu0 0.0
    %397 = vmatprep.subr.mxu0 0.0
    %398 = vmatpush1.msra.mxu0 0.0
    %399 = vmatprep.subr.mxu0 0.0
    %400 = vmatpush1.msra.mxu0 0.0
    %401 = vmatprep.subr.mxu0 0.0
    %402 = vmatpush1.msra.mxu0 0.0
    %403 = vmatprep.subr.mxu0 0.0
    %404 = vmatpush1.msra.mxu0 0.0
    %405 = vmatprep.mubr.f32.mxu0 0.0
    %406 = vmatmul.mubr.f32.gmra.mrb[0].mxu0 %v339
    %v407 = vpop.f32.mrb[0].mxu0
    %v408 = vadd.f32 0.0, %v407
    %v409 = vpop.f32.mrb[0].mxu0
    %410 = vdwg.mxu0
    %411 = vst.msk [vmem:[#allocation10] sm:$0xff] %vm81, %v335
    %412 = vst.msk [vmem:[#allocation10 + $0x8] sm:$0xff] %vm81, %v408
    // Predicated region
    $region34: #{tpu_custom_call.1} parent=1 // pred_check
      _
    $region35: #{tpu_custom_call.1} parent=1 // pred_check_branch
      %414 = sbr.rel (0) target = $region37
    $region36: #{tpu_custom_call.1} parent=1 // pred_region
      %s416 = ssub.s32 256, 256
      %417 = vsyncadd [#allocation4], %s416
      %s418 = sshll.u32 [#allocation10], 4
      %s419 = int_to_ptr.vmem [resolvable:$true] %s418
      %424 = dma.vmem_to_hbm [thread:$0]  %s419, 256, %s4, [#allocation4], 128, 128, 8
    $region37: #{tpu_custom_call.1} parent=1 // pred_fallthru
      _
    // Predicated region
    $region38: #{tpu_custom_call.1} parent=1 // pred_check
      _
    $region39: #{tpu_custom_call.1} parent=1 // pred_check_branch
      %426 = sbr.rel (0) target = $region41
    $region40: #{tpu_custom_call.1} parent=1 // pred_region
      %427 = dma.done [#allocation4], 256
    $region41: #{tpu_custom_call.1} parent=1 // pred_fallthru
      _
    %428 = vsyncpa [#allocation3], 1
    %429 = vsyncpa [#allocation6], 1
    %430 = vsyncpa [#allocation9], 1
    %431 = vsyncpa [#allocation4], 1

</llo_original>
